<compile_context>
chip_gen: v7x
topology: tpu7x:2x2x1
jax: 0.10.0
libtpu: 0.0.40
codegen_flags: <defaults>
</compile_context>

<pallas_src>
import numpy as np
import jax
import jax.numpy as jnp
from jax.experimental import pallas as pl
from jax.experimental.pallas import tpu as pltpu


def _round_up(x: int, m: int) -> int:
    return ((x + m - 1) // m) * m


def _pad2(x, rows, cols):
    return jnp.pad(x, ((0, rows - x.shape[0]), (0, cols - x.shape[1])))


# ----------------------------------------------------------------------------
# Kernel 1: masked MLP residual update (activation captured in vector_cache)
# ----------------------------------------------------------------------------
def _mlp_update_kernel(h_ref, wi_ref, bi_ref, wo_ref, bo_ref, out_ref):
    # h tile (Tt, Dp) bf16; weights are pre-masked, bf16, pinned in VMEM
    a = jnp.dot(h_ref[...], wi_ref[...],
                preferred_element_type=jnp.float32) + bi_ref[...]
    # TODO(synk): PyTorch nn.GELU defaults to exact erf; tanh-approx GELU used
    # here (erf has no guaranteed Mosaic lowering).  Elementwise kept in f32
    # so v5e (no bf16 VPU/EUP) is not penalized.
    a = jax.nn.gelu(a)
    out_ref[...] = (jnp.dot(a.astype(jnp.bfloat16), wo_ref[...],
                            preferred_element_type=jnp.float32) + bo_ref[...])


def mlp_residual_update(h, wi_eff, bi, wo_eff, bo, *, t_tile=256):
    """h: (T, D) f32 tokens.  wi_eff/wo_eff: pre-masked (Wi*Mi)/(Wo*Mo).

    Returns (T, Dp) f32 with Dp = round_up(D, 128); columns D: are exactly 0.
    """
    T, D = h.shape
    H = wi_eff.shape[1]
    Dp, Hp = _round_up(D, 128), _round_up(H, 128)
    Tp = _round_up(max(T, 1), t_tile)

    h_p = _pad2(h, Tp, Dp).astype(jnp.bfloat16)
    wi_p = _pad2(wi_eff, Dp, Hp).astype(jnp.bfloat16)
    wo_p = _pad2(wo_eff, Hp, Dp).astype(jnp.bfloat16)
    bi_p = _pad2(bi.reshape(1, -1), 1, Hp).astype(jnp.float32)
    bo_p = _pad2(bo.reshape(1, -1), 1, Dp).astype(jnp.float32)

    out = pl.pallas_call(
        _mlp_update_kernel,
        out_shape=jax.ShapeDtypeStruct((Tp, Dp), jnp.float32),
        grid=(Tp // t_tile,),
        in_specs=[
            pl.BlockSpec((t_tile, Dp), lambda i: (i, 0)),   # streamed token tiles
            pl.BlockSpec((Dp, Hp), lambda i: (0, 0)),       # resident weights
            pl.BlockSpec((1, Hp), lambda i: (0, 0)),
            pl.BlockSpec((Hp, Dp), lambda i: (0, 0)),
            pl.BlockSpec((1, Dp), lambda i: (0, 0)),
        ],
        out_specs=pl.BlockSpec((t_tile, Dp), lambda i: (i, 0)),
        compiler_params=pltpu.CompilerParams(
            dimension_semantics=("parallel",)),
    )(h_p, wi_p, bi_p, wo_p, bo_p)
    return out[:T]                                          # (T, Dp), lane-dense


# ----------------------------------------------------------------------------
# Kernel 2: representation-matching loss
#   rsm  = pairwise cosine similarity                         (N, N)
#   num  = sum_j exp(-(1-rsm[i,j])) * [i!=j] * [lab_i==lab_j] + eps
#   den  = sum_j exp(-(1-rsm[i,j])) * [i!=j]                  + eps
#   loss = -mean_i (log num_i - log den_i)
# Diagonal handled analytically: labels always match at i==j and
# e[i,i] = exp(|un_i|^2 - 1), so subtract that from both sums.
# ----------------------------------------------------------------------------
def _rm_loss_kernel(u_ref, lab_row_ref, lab_col_ref, loss_ref):
    u = u_ref[...].astype(jnp.float32)                       # (N, Dp)
    n = u.shape[0]

    sq = jnp.sum(u * u, axis=-1, keepdims=True)              # (N, 1)
    un = u * jax.lax.rsqrt(sq + 1e-30)                       # EUP rsqrt, no divide

    # cosine similarity: contract dim 1 of both operands (no explicit transpose)
    rsm = jax.lax.dot_general(un, un,
                              dimension_numbers=(((1,), (1,)), ((), ())),
                              preferred_element_type=jnp.float32)   # (N, N)
    e = jnp.exp(rsm - 1.0)                                   # exp(-rdm)

    concept = (lab_row_ref[...] == lab_col_ref[...]).astype(jnp.float32)  # (N,N)
    e_diag = jnp.exp(jnp.sum(un * un, axis=-1, keepdims=True) - 1.0)      # (N,1)

    eps = 1e-5
    num = jnp.sum(e * concept, axis=1, keepdims=True) - e_diag + eps      # (N,1)
    den = jnp.sum(e, axis=1, keepdims=True) - e_diag + eps                # (N,1)

    loss = -jnp.sum(jnp.log(num) - jnp.log(den)) / n
    loss_ref[...] = jnp.reshape(loss, (1, 1))


def representation_matching_loss(updates, labels):
    # TODO(synk): for large N, stream the NxN similarity in column tiles
    # (flash-style running num/den accumulators) instead of grid=(1,).
    N, D = updates.shape
    lab_row = labels.reshape(N, 1).astype(jnp.int32)
    lab_col = labels.reshape(1, N).astype(jnp.int32)
    full = lambda shape: pl.BlockSpec(shape, lambda i: tuple(0 for _ in shape))
    out = pl.pallas_call(
        _rm_loss_kernel,
        out_shape=jax.ShapeDtypeStruct((1, 1), jnp.float32),
        grid=(1,),
        in_specs=[full((N, D)), full((N, 1)), full((1, N))],
        out_specs=full((1, 1)),
    )(updates, lab_row, lab_col)
    return out[0, 0]


# ----------------------------------------------------------------------------
# CircuitProbe forward (glue)
# ----------------------------------------------------------------------------
def circuit_probe_forward(params, input_ids, labels, token_mask_np,
                          add_l0=False, l0_lambda=0.0):
    D = params["emb"].shape[1]

    # Token-mask gather fused in front of the MLP: the residual-update MLP is
    # strictly per-token, so selecting tokens at the embedding lookup gives the
    # same probed activations as masking afterwards, and skips wasted MXU work.
    sel = np.nonzero(np.asarray(token_mask_np).reshape(-1))[0]       # static
    ids_sel = input_ids.reshape(-1)[jnp.asarray(sel)]
    h_sel = params["emb"][ids_sel]                                   # (N, D)

    # Hoist the circuit-mask multiply out of the kernel (freeze_base semantics:
    # effective weight = base weight * binary mask, computed once).
    wi_eff = params["wi"] * params["mi"]
    wo_eff = params["wo"] * params["mo"]

    updates_padded = mlp_residual_update(h_sel, wi_eff, params["bi"],
                                         wo_eff, params["bo"])       # (N, Dp)

    # labels = labels[labels != -1]
    labels_np = np.asarray(labels).reshape(-1)
    labels_sel = labels_np[labels_np != -1]
    assert len(sel) == len(labels_sel)
    labels_sel = jnp.asarray(labels_sel, dtype=jnp.int32)

    # Feed the lane-dense (zero-padded-D) updates to the loss kernel; the
    # padding columns are exactly zero so cosine similarity is unchanged.
    loss = representation_matching_loss(updates_padded, labels_sel)

    updates_sel = updates_padded[:, :D]                              # (N, D)

    if add_l0:
        # TODO(synk): hard-concrete expected-L0 penalty of CircuitModel is not
        # reproduced here (mask parameterization lives outside this module).
        loss = loss + l0_lambda * 0.0

    return loss, updates_sel, labels_sel


# ----------------------------------------------------------------------------
if __name__ == "__main__":
    key = jax.random.PRNGKey(0)
    B, S, D, H, VOCAB = 2, 8, 32, 64, 50

    k_emb, k_wi, k_wo, k_ids, k_mi, k_mo = jax.random.split(key, 6)
    params = {
        "emb": jax.random.normal(k_emb, (VOCAB, D), jnp.float32) * 0.1,
        "wi": jax.random.normal(k_wi, (D, H), jnp.float32) * 0.1,
        "bi": jnp.zeros((1, H), jnp.float32),
        "wo": jax.random.normal(k_wo, (H, D), jnp.float32) * 0.1,
        "bo": jnp.zeros((1, D), jnp.float32),
        # binary circuit masks (freeze_base: base weights fixed, mask applied)
        "mi": (jax.random.uniform(k_mi, (D, H)) > 0.3).astype(jnp.float32),
        "mo": (jax.random.uniform(k_mo, (H, D)) > 0.3).astype(jnp.float32),
    }

    input_ids = jax.random.randint(k_ids, (B, S), 0, VOCAB)

    # deterministic token mask: first 6 tokens of each sequence are probed
    token_mask_np = np.zeros((B, S), dtype=bool)
    token_mask_np[:, :6] = True

    # labels: -1 where unmasked, class id {0,1,2} where masked
    labels_np = -np.ones((B, S), dtype=np.int32)
    labels_np[:, :6] = np.arange(6).reshape(1, 6) % 3

    loss, updates_sel, labels_sel = circuit_probe_forward(
        params, input_ids, labels_np, token_mask_np, add_l0=False)

    jax.block_until_ready(loss)
    jax.block_until_ready(updates_sel)
    assert updates_sel.shape == (int(token_mask_np.sum()), D)
    assert labels_sel.shape == (int(token_mask_np.sum()),)
    assert bool(jnp.isfinite(loss))
    print("KERNEL_OK")
</pallas_src>

<mosaic_0001>
module attributes {stable_mosaic.version = 11 : i64} {
  func.func @_mlp_update_kernel(%arg0: i32, %arg1: memref<256x128xbf16, #tpu.memory_space<vmem>>, %arg2: memref<128x128xbf16, #tpu.memory_space<vmem>>, %arg3: memref<1x128xf32, #tpu.memory_space<vmem>>, %arg4: memref<128x128xbf16, #tpu.memory_space<vmem>>, %arg5: memref<1x128xf32, #tpu.memory_space<vmem>>, %arg6: memref<256x128xf32, #tpu.memory_space<vmem>>) attributes {dimension_semantics = [#tpu.dimension_semantics<parallel>], iteration_bounds = array<i64: 1>, scalar_prefetch = 0 : i64, scratch_operands = 0 : i64, tpu.core_type = #tpu.core_type<tc>, window_params = [{transform_indices = @transform_0, window_bounds = array<i64: 256, 128>}, {pipeline_mode = #tpu.pipeline_mode<synchronous>, transform_indices = @transform_1, window_bounds = array<i64: 128, 128>}, {pipeline_mode = #tpu.pipeline_mode<synchronous>, transform_indices = @transform_2, window_bounds = array<i64: 1, 128>}, {pipeline_mode = #tpu.pipeline_mode<synchronous>, transform_indices = @transform_3, window_bounds = array<i64: 128, 128>}, {pipeline_mode = #tpu.pipeline_mode<synchronous>, transform_indices = @transform_4, window_bounds = array<i64: 1, 128>}, {transform_indices = @transform_5, window_bounds = array<i64: 256, 128>}]} {
    %c0 = arith.constant 0 : index
    %c0_0 = arith.constant 0 : index
    %0 = vector.load %arg1[%c0, %c0_0] : memref<256x128xbf16, #tpu.memory_space<vmem>>, vector<256x128xbf16>
    %c0_1 = arith.constant 0 : index
    %c0_2 = arith.constant 0 : index
    %1 = vector.load %arg2[%c0_1, %c0_2] : memref<128x128xbf16, #tpu.memory_space<vmem>>, vector<128x128xbf16>
    %cst = arith.constant dense<0.000000e+00> : vector<256x128xf32>
    %2 = tpu.matmul %0, %1, %cst {dimension_numbers = #tpu.dot_dimension_numbers<[1], [0], [0], [1], [0, 0, 1, 1], [], []>} : vector<256x128xbf16>, vector<128x128xbf16>, vector<256x128xf32> -> vector<256x128xf32>
    %c0_3 = arith.constant 0 : index
    %c0_4 = arith.constant 0 : index
    %3 = vector.load %arg3[%c0_3, %c0_4] : memref<1x128xf32, #tpu.memory_space<vmem>>, vector<1x128xf32>
    %4 = vector.broadcast %3 : vector<1x128xf32> to vector<256x128xf32>
    %5 = arith.addf %2, %4 : vector<256x128xf32>
    %6 = arith.mulf %5, %5 : vector<256x128xf32>
    %7 = arith.mulf %5, %6 : vector<256x128xf32>
    %cst_5 = arith.constant 4.471500e-02 : f32
    %8 = vector.broadcast %cst_5 : f32 to vector<256x128xf32>
    %9 = arith.mulf %8, %7 : vector<256x128xf32>
    %10 = arith.addf %5, %9 : vector<256x128xf32>
    %cst_6 = arith.constant 0.797884583 : f32
    %11 = vector.broadcast %cst_6 : f32 to vector<256x128xf32>
    %12 = arith.mulf %11, %10 : vector<256x128xf32>
    %13 = math.tanh %12 : vector<256x128xf32>
    %cst_7 = arith.constant 1.000000e+00 : f32
    %14 = vector.broadcast %cst_7 : f32 to vector<256x128xf32>
    %15 = arith.addf %14, %13 : vector<256x128xf32>
    %cst_8 = arith.constant 5.000000e-01 : f32
    %16 = vector.broadcast %cst_8 : f32 to vector<256x128xf32>
    %17 = arith.mulf %16, %15 : vector<256x128xf32>
    %18 = arith.mulf %5, %17 : vector<256x128xf32>
    %19 = arith.truncf %18 : vector<256x128xf32> to vector<256x128xbf16>
    %c0_9 = arith.constant 0 : index
    %c0_10 = arith.constant 0 : index
    %20 = vector.load %arg4[%c0_9, %c0_10] : memref<128x128xbf16, #tpu.memory_space<vmem>>, vector<128x128xbf16>
    %cst_11 = arith.constant dense<0.000000e+00> : vector<256x128xf32>
    %21 = tpu.matmul %19, %20, %cst_11 {dimension_numbers = #tpu.dot_dimension_numbers<[1], [0], [0], [1], [0, 0, 1, 1], [], []>} : vector<256x128xbf16>, vector<128x128xbf16>, vector<256x128xf32> -> vector<256x128xf32>
    %c0_12 = arith.constant 0 : index
    %c0_13 = arith.constant 0 : index
    %22 = vector.load %arg5[%c0_12, %c0_13] : memref<1x128xf32, #tpu.memory_space<vmem>>, vector<1x128xf32>
    %23 = vector.broadcast %22 : vector<1x128xf32> to vector<256x128xf32>
    %24 = arith.addf %21, %23 : vector<256x128xf32>
    %c0_14 = arith.constant 0 : index
    %c0_15 = arith.constant 0 : index
    %25 = vector.load %arg6[%c0_14, %c0_15] : memref<256x128xf32, #tpu.memory_space<vmem>>, vector<256x128xf32>
    tpu.vector_store %arg6[%c0_14, %c0_15], %24 {strides = array<i32>} : memref<256x128xf32, #tpu.memory_space<vmem>>, vector<256x128xf32>,
    return
  }
  func.func @transform_0(%arg0: i32) -> (i32, i32) {
    %c0_i32 = arith.constant 0 : i32
    %c0_i32_0 = arith.constant 0 : i32
    return %arg0, %c0_i32 : i32, i32
  }
  func.func @transform_1(%arg0: i32) -> (i32, i32) {
    %c0_i32 = arith.constant 0 : i32
    %c0_i32_0 = arith.constant 0 : i32
    %c0_i32_1 = arith.constant 0 : i32
    return %c0_i32, %c0_i32_0 : i32, i32
  }
  func.func @transform_2(%arg0: i32) -> (i32, i32) {
    %c0_i32 = arith.constant 0 : i32
    %c0_i32_0 = arith.constant 0 : i32
    %c0_i32_1 = arith.constant 0 : i32
    return %c0_i32, %c0_i32_0 : i32, i32
  }
  func.func @transform_3(%arg0: i32) -> (i32, i32) {
    %c0_i32 = arith.constant 0 : i32
    %c0_i32_0 = arith.constant 0 : i32
    %c0_i32_1 = arith.constant 0 : i32
    return %c0_i32, %c0_i32_0 : i32, i32
  }
  func.func @transform_4(%arg0: i32) -> (i32, i32) {
    %c0_i32 = arith.constant 0 : i32
    %c0_i32_0 = arith.constant 0 : i32
    %c0_i32_1 = arith.constant 0 : i32
    return %c0_i32, %c0_i32_0 : i32, i32
  }
  func.func @transform_5(%arg0: i32) -> (i32, i32) {
    %c0_i32 = arith.constant 0 : i32
    %c0_i32_0 = arith.constant 0 : i32
    return %arg0, %c0_i32 : i32, i32
  }
}

</mosaic_0001>

<llo_original>
// kernel: tpu_custom_call.1
$region0: #{tpu_custom_call.1}
  #allocation0 [shape = 'u32[]', space=smem, size = 0x4, offset = 0x4, fixed_abs, tag = 'smem constant byte address 0x4 - core index']
  #allocation1 [shape = 'u32[144,128]{1,0:T(1,128)}', space=vmem, size = 0x12000, scoped, tag = 'internal scratch']
  %s0 = inlined_call_operand.hbm [shape: bf16[256,128], index: 0, kind: input, shape index: {}]
  %s1 = inlined_call_operand.hbm [shape: bf16[128,128], index: 1, kind: input, shape index: {}]
  %s2 = inlined_call_operand.vmem [shape: f32[1,128], index: 2, kind: input, shape index: {}]
  %s3 = inlined_call_operand.hbm [shape: bf16[128,128], index: 3, kind: input, shape index: {}]
  %s4 = inlined_call_operand.vmem [shape: f32[1,128], index: 4, kind: input, shape index: {}]
  %s5 = inlined_call_operand.hbm [shape: f32[256,128], index: 5, kind: output, shape index: {}]
  %s6 = sld [smem:[#allocation0]]
  $region42: #{tpu_custom_call.1} parent=0
    _
  %s8 = ssub.s32 1, %s6
  %s9 = scalar_select 0, %s8, %s6
  $region1: #{tpu_custom_call.1} parent=0
    #allocation2 [shape = 'u8[65536]{0}', space=vmem, size = 0x10000, scoped, tag = 'input window, operand 0, single buffered']
    #allocation3 [shape = 's32[1]{0}', space=sflag, size = 0x4, scoped, tag = 'scoped memory for tpu_custom_call.1']
    #allocation4 [shape = 's32[1]{0}', space=sflag, size = 0x4, scoped, tag = 'scoped memory for tpu_custom_call.1']
    #allocation5 [shape = 'u8[32768]{0}', space=vmem, size = 0x8000, scoped, tag = 'input window, operand 1, single buffered']
    #allocation6 [shape = 's32[1]{0}', space=sflag, size = 0x4, scoped, tag = 'scoped memory for tpu_custom_call.1']
    #allocation7 [shape = 'u8[32768]{0}', space=vmem, size = 0x8000, scoped, tag = 'input window, operand 3, single buffered']
    #allocation8 [shape = 'u8[131072]{0}', space=vmem, size = 0x20000, scoped, tag = 'output window, operand 0, single buffered']
    %10 = vsyncpa [#allocation3], 0
    %11 = vsyncpa [#allocation6], 0
    %12 = vsyncpa [#allocation4], 0
    // Predicated region
    $region2: #{tpu_custom_call.1} parent=1 // pred_check
      _
    $region3: #{tpu_custom_call.1} parent=1 // pred_check_branch
      %14 = sbr.rel (0) target = $region5
    $region4: #{tpu_custom_call.1} parent=1 // pred_region
      %s16 = ssub.s32 2048, 2048
      %17 = vsyncadd [#allocation3], %s16
      %s18 = sshll.u32 [#allocation2], 4
      %s19 = int_to_ptr.vmem [resolvable:$true] %s18
      %24 = dma.hbm_to_vmem [thread:$0]  %s0, 2048, %s19, [#allocation3], 64, 64, 4
    $region5: #{tpu_custom_call.1} parent=1 // pred_fallthru
      _
    // Predicated region
    $region6: #{tpu_custom_call.1} parent=1 // pred_check
      _
    $region7: #{tpu_custom_call.1} parent=1 // pred_check_branch
      %26 = sbr.rel (0) target = $region9
    $region8: #{tpu_custom_call.1} parent=1 // pred_region
      %s28 = ssub.s32 1024, 1024
      %29 = vsyncadd [#allocation6], %s28
      %s30 = sshll.u32 [#allocation5], 4
      %s31 = int_to_ptr.vmem [resolvable:$true] %s30
      %36 = dma.hbm_to_vmem [thread:$0]  %s1, 1024, %s31, [#allocation6], 64, 64, 4
    $region9: #{tpu_custom_call.1} parent=1 // pred_fallthru
      _
    // Predicated region
    $region10: #{tpu_custom_call.1} parent=1 // pred_check
      _
    $region11: #{tpu_custom_call.1} parent=1 // pred_check_branch
      %38 = sbr.rel (0) target = $region13
    $region12: #{tpu_custom_call.1} parent=1 // pred_region
      _
    $region13: #{tpu_custom_call.1} parent=1 // pred_fallthru
      _
    // Predicated region
    $region14: #{tpu_custom_call.1} parent=1 // pred_check
      _
    $region15: #{tpu_custom_call.1} parent=1 // pred_check_branch
      %40 = sbr.rel (0) target = $region17
    $region16: #{tpu_custom_call.1} parent=1 // pred_region
      %s42 = ssub.s32 1024, 1024
      %43 = vsyncadd [#allocation6], %s42
      %s44 = sshll.u32 [#allocation7], 4
      %s45 = int_to_ptr.vmem [resolvable:$true] %s44
      %50 = dma.hbm_to_vmem [thread:$0]  %s3, 1024, %s45, [#allocation6], 64, 64, 4
    $region17: #{tpu_custom_call.1} parent=1 // pred_fallthru
      _
    // Predicated region
    $region18: #{tpu_custom_call.1} parent=1 // pred_check
      _
    $region19: #{tpu_custom_call.1} parent=1 // pred_check_branch
      %52 = sbr.rel (0) target = $region21
    $region20: #{tpu_custom_call.1} parent=1 // pred_region
      _
    $region21: #{tpu_custom_call.1} parent=1 // pred_fallthru
      _
    // Predicated region
    $region22: #{tpu_custom_call.1} parent=1 // pred_check
      _
    $region23: #{tpu_custom_call.1} parent=1 // pred_check_branch
      %54 = sbr.rel (0) target = $region25
    $region24: #{tpu_custom_call.1} parent=1 // pred_region
      %55 = dma.done [#allocation3], 2048
    $region25: #{tpu_custom_call.1} parent=1 // pred_fallthru
      _
    // Predicated region
    $region26: #{tpu_custom_call.1} parent=1 // pred_check
      _
    $region27: #{tpu_custom_call.1} parent=1 // pred_check_branch
      %57 = sbr.rel (0) target = $region29
    $region28: #{tpu_custom_call.1} parent=1 // pred_region
      %58 = dma.done [#allocation6], 1024
    $region29: #{tpu_custom_call.1} parent=1 // pred_fallthru
      _
    // Predicated region
    $region30: #{tpu_custom_call.1} parent=1 // pred_check
      _
    $region31: #{tpu_custom_call.1} parent=1 // pred_check_branch
      %60 = sbr.rel (0) target = $region33
    $region32: #{tpu_custom_call.1} parent=1 // pred_region
      %61 = dma.done [#allocation6], 1024
    $region33: #{tpu_custom_call.1} parent=1 // pred_fallthru
      _
    %v63 = vld [vmem:[#allocation2] sm:$0xf]
    %v64 = vld [vmem:[#allocation2 + $0x4] sm:$0xf]
    %v65 = vld [vmem:[#allocation2 + $0x8] sm:$0xf]
    %v66 = vld [vmem:[#allocation2 + $0xc] sm:$0xf]
    %v67 = vld [vmem:[#allocation2 + $0x10] sm:$0xf]
    %v68 = vld [vmem:[#allocation2 + $0x14] sm:$0xf]
    %v69 = vld [vmem:[#allocation2 + $0x18] sm:$0xf]
    %v70 = vld [vmem:[#allocation2 + $0x1c] sm:$0xf]
    %v71 = vld [vmem:[#allocation2 + $0x20] sm:$0xf]
    %v72 = vld [vmem:[#allocation2 + $0x24] sm:$0xf]
    %v73 = vld [vmem:[#allocation2 + $0x28] sm:$0xf]
    %v74 = vld [vmem:[#allocation2 + $0x2c] sm:$0xf]
    %v75 = vld [vmem:[#allocation2 + $0x30] sm:$0xf]
    %v76 = vld [vmem:[#allocation2 + $0x34] sm:$0xf]
    %v77 = vld [vmem:[#allocation2 + $0x38] sm:$0xf]
    %v78 = vld [vmem:[#allocation2 + $0x3c] sm:$0xf]
    %v79 = vld [vmem:[#allocation2 + $0x40] sm:$0xf]
    %v80 = vld [vmem:[#allocation2 + $0x44] sm:$0xf]
    %v81 = vld [vmem:[#allocation2 + $0x48] sm:$0xf]
    %v82 = vld [vmem:[#allocation2 + $0x4c] sm:$0xf]
    %v83 = vld [vmem:[#allocation2 + $0x50] sm:$0xf]
    %v84 = vld [vmem:[#allocation2 + $0x54] sm:$0xf]
    %v85 = vld [vmem:[#allocation2 + $0x58] sm:$0xf]
    %v86 = vld [vmem:[#allocation2 + $0x5c] sm:$0xf]
    %v87 = vld [vmem:[#allocation2 + $0x60] sm:$0xf]
    %v88 = vld [vmem:[#allocation2 + $0x64] sm:$0xf]
    %v89 = vld [vmem:[#allocation2 + $0x68] sm:$0xf]
    %v90 = vld [vmem:[#allocation2 + $0x6c] sm:$0xf]
    %v91 = vld [vmem:[#allocation2 + $0x70] sm:$0xf]
    %v92 = vld [vmem:[#allocation2 + $0x74] sm:$0xf]
    %v93 = vld [vmem:[#allocation2 + $0x78] sm:$0xf]
    %v94 = vld [vmem:[#allocation2 + $0x7c] sm:$0xf]
    %v95 = vld [vmem:[#allocation5] sm:$0xf]
    %v96 = vld [vmem:[#allocation5 + $0x4] sm:$0xf]
    %v97 = vld [vmem:[#allocation5 + $0x8] sm:$0xf]
    %v98 = vld [vmem:[#allocation5 + $0xc] sm:$0xf]
    %v99 = vld [vmem:[#allocation5 + $0x10] sm:$0xf]
    %v100 = vld [vmem:[#allocation5 + $0x14] sm:$0xf]
    %v101 = vld [vmem:[#allocation5 + $0x18] sm:$0xf]
    %v102 = vld [vmem:[#allocation5 + $0x1c] sm:$0xf]
    %v103 = vld [vmem:[#allocation5 + $0x20] sm:$0xf]
    %v104 = vld [vmem:[#allocation5 + $0x24] sm:$0xf]
    %v105 = vld [vmem:[#allocation5 + $0x28] sm:$0xf]
    %v106 = vld [vmem:[#allocation5 + $0x2c] sm:$0xf]
    %v107 = vld [vmem:[#allocation5 + $0x30] sm:$0xf]
    %v108 = vld [vmem:[#allocation5 + $0x34] sm:$0xf]
    %v109 = vld [vmem:[#allocation5 + $0x38] sm:$0xf]
    %v110 = vld [vmem:[#allocation5 + $0x3c] sm:$0xf]
    %v111 = vld [vmem:[%s2] sm:$0x1]
    %v113 = vlaneseq
    %v114 = vshrl.u32 %v113, 7
    %v115 = vsub.s32 0, %v114
    %v116 = vrot.slane %v111, %v115
    %v150 = vunpack.c.l.b16 %v63
    %v151 = vunpack.c.l.b16 %v64
    %v152 = vunpack.c.l.b16 %v65
    %v153 = vunpack.c.l.b16 %v66
    %v154 = vunpack.c.l.b16 %v67
    %v155 = vunpack.c.l.b16 %v68
    %v156 = vunpack.c.l.b16 %v69
    %v157 = vunpack.c.l.b16 %v70
    %v158 = vunpack.c.l.b16 %v71
    %v159 = vunpack.c.l.b16 %v72
    %v160 = vunpack.c.l.b16 %v73
    %v161 = vunpack.c.l.b16 %v74
    %v162 = vunpack.c.l.b16 %v75
    %v163 = vunpack.c.l.b16 %v76
    %v164 = vunpack.c.l.b16 %v77
    %v165 = vunpack.c.l.b16 %v78
    %v166 = vunpack.c.l.b16 %v79
    %v167 = vunpack.c.l.b16 %v80
    %v168 = vunpack.c.l.b16 %v81
    %v169 = vunpack.c.l.b16 %v82
    %v170 = vunpack.c.l.b16 %v83
    %v171 = vunpack.c.l.b16 %v84
    %v172 = vunpack.c.l.b16 %v85
    %v173 = vunpack.c.l.b16 %v86
    %v174 = vunpack.c.l.b16 %v87
    %v175 = vunpack.c.l.b16 %v88
    %v176 = vunpack.c.l.b16 %v89
    %v177 = vunpack.c.l.b16 %v90
    %v178 = vunpack.c.l.b16 %v91
    %v179 = vunpack.c.l.b16 %v92
    %v180 = vunpack.c.l.b16 %v93
    %v181 = vunpack.c.l.b16 %v94
    %v182 = vpack.c.b16 %v151, %v150
    %v183 = vpack.c.b16 %v153, %v152
    %v184 = vpack.c.b16 %v155, %v154
    %v185 = vpack.c.b16 %v157, %v156
    %v186 = vpack.c.b16 %v159, %v158
    %v187 = vpack.c.b16 %v161, %v160
    %v188 = vpack.c.b16 %v163, %v162
    %v189 = vpack.c.b16 %v165, %v164
    %v190 = vpack.c.b16 %v167, %v166
    %v191 = vpack.c.b16 %v169, %v168
    %v192 = vpack.c.b16 %v171, %v170
    %v193 = vpack.c.b16 %v173, %v172
    %v194 = vpack.c.b16 %v175, %v174
    %v195 = vpack.c.b16 %v177, %v176
    %v196 = vpack.c.b16 %v179, %v178
    %v197 = vpack.c.b16 %v181, %v180
    %v230 = vunpack.c.l.b16 %v95
    %v231 = vunpack.c.l.b16 %v96
    %v232 = vunpack.c.l.b16 %v97
    %v233 = vunpack.c.l.b16 %v98
    %v234 = vunpack.c.l.b16 %v99
    %v235 = vunpack.c.l.b16 %v100
    %v236 = vunpack.c.l.b16 %v101
    %v237 = vunpack.c.l.b16 %v102
    %v238 = vunpack.c.l.b16 %v103
    %v239 = vunpack.c.l.b16 %v104
    %v240 = vunpack.c.l.b16 %v105
    %v241 = vunpack.c.l.b16 %v106
    %v242 = vunpack.c.l.b16 %v107
    %v243 = vunpack.c.l.b16 %v108
    %v244 = vunpack.c.l.b16 %v109
    %v245 = vunpack.c.l.b16 %v110
    %v246 = vpack.c.b16 %v231, %v230
    %v247 = vpack.c.b16 %v233, %v232
    %v248 = vpack.c.b16 %v235, %v234
    %v249 = vpack.c.b16 %v237, %v236
    %v250 = vpack.c.b16 %v239, %v238
    %v251 = vpack.c.b16 %v241, %v240
    %v252 = vpack.c.b16 %v243, %v242
    %v253 = vpack.c.b16 %v245, %v244
    %262 = vmatprep.subr.bf16.mxu0 0
    %263 = vmatpush1.bf16.msra.mxu0 %v246
    %264 = vmatprep.subr.bf16.mxu0 0
    %265 = vmatpush1.bf16.msra.mxu0 %v247
    %266 = vmatprep.subr.bf16.mxu0 0
    %267 = vmatpush1.bf16.msra.mxu0 %v248
    %268 = vmatprep.subr.bf16.mxu0 0
    %269 = vmatpush1.bf16.msra.mxu0 %v249
    %270 = vmatprep.subr.bf16.mxu0 0
    %271 = vmatpush1.bf16.msra.mxu0 %v250
    %272 = vmatprep.subr.bf16.mxu0 0
    %273 = vmatpush1.bf16.msra.mxu0 %v251
    %274 = vmatprep.subr.bf16.mxu0 0
    %275 = vmatpush1.bf16.msra.mxu0 %v252
    %276 = vmatprep.subr.bf16.mxu0 0
    %277 = vmatpush1.bf16.msra.mxu0 %v253
    %278 = vmatprep.subr.bf16.mxu0 0
    %279 = vmatpush1.bf16.msra.mxu0 0
    %280 = vmatprep.subr.bf16.mxu0 0
    %281 = vmatpush1.bf16.msra.mxu0 0
    %282 = vmatprep.subr.bf16.mxu0 0
    %283 = vmatpush1.bf16.msra.mxu0 0
    %284 = vmatprep.subr.bf16.mxu0 0
    %285 = vmatpush1.bf16.msra.mxu0 0
    %286 = vmatprep.subr.bf16.mxu0 0
    %287 = vmatpush1.bf16.msra.mxu0 0
    %288 = vmatprep.subr.bf16.mxu0 0
    %289 = vmatpush1.bf16.msra.mxu0 0
    %290 = vmatprep.subr.bf16.mxu0 0
    %291 = vmatpush1.bf16.msra.mxu0 0
    %292 = vmatprep.subr.bf16.mxu0 0
    %293 = vmatpush1.bf16.msra.mxu0 0
    %294 = vmatprep.mubr.bf16.mxu0 0
    %295 = vmatmul.mubr.bf16.gmra.mrb[0].mxu0 %v182
    %v296 = vpop.f32.mrb[0].mxu0
    %v297 = vadd.f32 %v116, %v296
    %v298 = vpop.f32.mrb[0].mxu0
    %v299 = vpop.f32.mrb[0].mxu0
    %v300 = vadd.f32 %v116, %v299
    %v301 = vpop.f32.mrb[0].mxu0
    %302 = vmatprep.mubr.bf16.mxu0 0
    %303 = vmatmul.mubr.bf16.gmra.mrb[0].mxu0 %v183
    %v304 = vpop.f32.mrb[0].mxu0
    %v305 = vadd.f32 %v116, %v304
    %v306 = vpop.f32.mrb[0].mxu0
    %v307 = vpop.f32.mrb[0].mxu0
    %v308 = vadd.f32 %v116, %v307
    %v309 = vpop.f32.mrb[0].mxu0
    %310 = vmatprep.mubr.bf16.mxu0 0
    %311 = vmatmul.mubr.bf16.gmra.mrb[0].mxu0 %v184
    %v312 = vpop.f32.mrb[0].mxu0
    %v313 = vadd.f32 %v116, %v312
    %v314 = vpop.f32.mrb[0].mxu0
    %v315 = vpop.f32.mrb[0].mxu0
    %v316 = vadd.f32 %v116, %v315
    %v317 = vpop.f32.mrb[0].mxu0
    %318 = vmatprep.mubr.bf16.mxu0 0
    %319 = vmatmul.mubr.bf16.gmra.mrb[0].mxu0 %v185
    %v320 = vpop.f32.mrb[0].mxu0
    %v321 = vadd.f32 %v116, %v320
    %v322 = vpop.f32.mrb[0].mxu0
    %v323 = vpop.f32.mrb[0].mxu0
    %v324 = vadd.f32 %v116, %v323
    %v325 = vpop.f32.mrb[0].mxu0
    %326 = vmatprep.mubr.bf16.mxu0 0
    %327 = vmatmul.mubr.bf16.gmra.mrb[0].mxu0 %v186
    %v328 = vpop.f32.mrb[0].mxu0
    %v329 = vadd.f32 %v116, %v328
    %v330 = vpop.f32.mrb[0].mxu0
    %v331 = vpop.f32.mrb[0].mxu0
    %v332 = vadd.f32 %v116, %v331
    %v333 = vpop.f32.mrb[0].mxu0
    %334 = vmatprep.mubr.bf16.mxu0 0
    %335 = vmatmul.mubr.bf16.gmra.mrb[0].mxu0 %v187
    %v336 = vpop.f32.mrb[0].mxu0
    %v337 = vadd.f32 %v116, %v336
    %v338 = vpop.f32.mrb[0].mxu0
    %v339 = vpop.f32.mrb[0].mxu0
    %v340 = vadd.f32 %v116, %v339
    %v341 = vpop.f32.mrb[0].mxu0
    %342 = vmatprep.mubr.bf16.mxu0 0
    %343 = vmatmul.mubr.bf16.gmra.mrb[0].mxu0 %v188
    %v344 = vpop.f32.mrb[0].mxu0
    %v345 = vadd.f32 %v116, %v344
    %v346 = vpop.f32.mrb[0].mxu0
    %v347 = vpop.f32.mrb[0].mxu0
    %v348 = vadd.f32 %v116, %v347
    %v349 = vpop.f32.mrb[0].mxu0
    %350 = vmatprep.mubr.bf16.mxu0 0
    %351 = vmatmul.mubr.bf16.gmra.mrb[0].mxu0 %v189
    %v352 = vpop.f32.mrb[0].mxu0
    %v353 = vadd.f32 %v116, %v352
    %v354 = vpop.f32.mrb[0].mxu0
    %v355 = vpop.f32.mrb[0].mxu0
    %v356 = vadd.f32 %v116, %v355
    %v357 = vpop.f32.mrb[0].mxu0
    %358 = vmatprep.mubr.bf16.mxu0 0
    %359 = vmatmul.mubr.bf16.gmra.mrb[0].mxu0 %v190
    %v360 = vpop.f32.mrb[0].mxu0
    %v361 = vadd.f32 %v116, %v360
    %v362 = vpop.f32.mrb[0].mxu0
    %v363 = vpop.f32.mrb[0].mxu0
    %v364 = vadd.f32 %v116, %v363
    %v365 = vpop.f32.mrb[0].mxu0
    %366 = vmatprep.mubr.bf16.mxu0 0
    %367 = vmatmul.mubr.bf16.gmra.mrb[0].mxu0 %v191
    %v368 = vpop.f32.mrb[0].mxu0
    %v369 = vadd.f32 %v116, %v368
    %v370 = vpop.f32.mrb[0].mxu0
    %v371 = vpop.f32.mrb[0].mxu0
    %v372 = vadd.f32 %v116, %v371
    %v373 = vpop.f32.mrb[0].mxu0
    %374 = vmatprep.mubr.bf16.mxu0 0
    %375 = vmatmul.mubr.bf16.gmra.mrb[0].mxu0 %v192
    %v376 = vpop.f32.mrb[0].mxu0
    %v377 = vadd.f32 %v116, %v376
    %v378 = vpop.f32.mrb[0].mxu0
    %v379 = vpop.f32.mrb[0].mxu0
    %v380 = vadd.f32 %v116, %v379
    %v381 = vpop.f32.mrb[0].mxu0
    %382 = vmatprep.mubr.bf16.mxu0 0
    %383 = vmatmul.mubr.bf16.gmra.mrb[0].mxu0 %v193
    %v384 = vpop.f32.mrb[0].mxu0
    %v385 = vadd.f32 %v116, %v384
    %v386 = vpop.f32.mrb[0].mxu0
    %v387 = vpop.f32.mrb[0].mxu0
    %v388 = vadd.f32 %v116, %v387
    %v389 = vpop.f32.mrb[0].mxu0
    %390 = vmatprep.mubr.bf16.mxu0 0
    %391 = vmatmul.mubr.bf16.gmra.mrb[0].mxu0 %v194
    %v392 = vpop.f32.mrb[0].mxu0
    %v393 = vadd.f32 %v116, %v392
    %v394 = vpop.f32.mrb[0].mxu0
    %v395 = vpop.f32.mrb[0].mxu0
    %v396 = vadd.f32 %v116, %v395
    %v397 = vpop.f32.mrb[0].mxu0
    %398 = vmatprep.mubr.bf16.mxu0 0
    %399 = vmatmul.mubr.bf16.gmra.mrb[0].mxu0 %v195
    %v400 = vpop.f32.mrb[0].mxu0
    %v401 = vadd.f32 %v116, %v400
    %v402 = vpop.f32.mrb[0].mxu0
    %v403 = vpop.f32.mrb[0].mxu0
    %v404 = vadd.f32 %v116, %v403
    %v405 = vpop.f32.mrb[0].mxu0
    %406 = vmatprep.mubr.bf16.mxu0 0
    %407 = vmatmul.mubr.bf16.gmra.mrb[0].mxu0 %v196
    %v408 = vpop.f32.mrb[0].mxu0
    %v409 = vadd.f32 %v116, %v408
    %v410 = vpop.f32.mrb[0].mxu0
    %v411 = vpop.f32.mrb[0].mxu0
    %v412 = vadd.f32 %v116, %v411
    %v413 = vpop.f32.mrb[0].mxu0
    %414 = vmatprep.mubr.bf16.mxu0 0
    %415 = vmatmul.mubr.bf16.gmra.mrb[0].mxu0 %v197
    %v416 = vpop.f32.mrb[0].mxu0
    %v417 = vadd.f32 %v116, %v416
    %v418 = vpop.f32.mrb[0].mxu0
    %v419 = vpop.f32.mrb[0].mxu0
    %v420 = vadd.f32 %v116, %v419
    %v421 = vpop.f32.mrb[0].mxu0
    %422 = vdwg.mxu0
    %v423 = vmul.f32 %v297, %v297
    %v424 = vmul.f32 %v300, %v300
    %v425 = vmul.f32 %v305, %v305
    %v426 = vmul.f32 %v308, %v308
    %v427 = vmul.f32 %v313, %v313
    %v428 = vmul.f32 %v316, %v316
    %v429 = vmul.f32 %v321, %v321
    %v430 = vmul.f32 %v324, %v324
    %v431 = vmul.f32 %v329, %v329
    %v432 = vmul.f32 %v332, %v332
    %v433 = vmul.f32 %v337, %v337
    %v434 = vmul.f32 %v340, %v340
    %v435 = vmul.f32 %v345, %v345
    %v436 = vmul.f32 %v348, %v348
    %v437 = vmul.f32 %v353, %v353
    %v438 = vmul.f32 %v356, %v356
    %v439 = vmul.f32 %v361, %v361
    %v440 = vmul.f32 %v364, %v364
    %v441 = vmul.f32 %v369, %v369
    %v442 = vmul.f32 %v372, %v372
    %v443 = vmul.f32 %v377, %v377
    %v444 = vmul.f32 %v380, %v380
    %v445 = vmul.f32 %v385, %v385
    %v446 = vmul.f32 %v388, %v388
    %v447 = vmul.f32 %v393, %v393
    %v448 = vmul.f32 %v396, %v396
    %v449 = vmul.f32 %v401, %v401
    %v450 = vmul.f32 %v404, %v404
    %v451 = vmul.f32 %v409, %v409
    %v452 = vmul.f32 %v412, %v412
    %v453 = vmul.f32 %v417, %v417
    %v454 = vmul.f32 %v420, %v420
    %v455 = vmul.f32 %v297, %v423
    %v456 = vmul.f32 %v300, %v424
    %v457 = vmul.f32 %v305, %v425
    %v458 = vmul.f32 %v308, %v426
    %v459 = vmul.f32 %v313, %v427
    %v460 = vmul.f32 %v316, %v428
    %v461 = vmul.f32 %v321, %v429
    %v462 = vmul.f32 %v324, %v430
    %v463 = vmul.f32 %v329, %v431
    %v464 = vmul.f32 %v332, %v432
    %v465 = vmul.f32 %v337, %v433
    %v466 = vmul.f32 %v340, %v434
    %v467 = vmul.f32 %v345, %v435
    %v468 = vmul.f32 %v348, %v436
    %v469 = vmul.f32 %v353, %v437
    %v470 = vmul.f32 %v356, %v438
    %v471 = vmul.f32 %v361, %v439
    %v472 = vmul.f32 %v364, %v440
    %v473 = vmul.f32 %v369, %v441
    %v474 = vmul.f32 %v372, %v442
    %v475 = vmul.f32 %v377, %v443
    %v476 = vmul.f32 %v380, %v444
    %v477 = vmul.f32 %v385, %v445
    %v478 = vmul.f32 %v388, %v446
    %v479 = vmul.f32 %v393, %v447
    %v480 = vmul.f32 %v396, %v448
    %v481 = vmul.f32 %v401, %v449
    %v482 = vmul.f32 %v404, %v450
    %v483 = vmul.f32 %v409, %v451
    %v484 = vmul.f32 %v412, %v452
    %v485 = vmul.f32 %v417, %v453
    %v486 = vmul.f32 %v420, %v454
    %v487 = vmul.f32 %v455, 0.044715
    %v488 = vmul.f32 %v456, 0.044715
    %v489 = vmul.f32 %v457, 0.044715
    %v490 = vmul.f32 %v458, 0.044715
    %v491 = vmul.f32 %v459, 0.044715
    %v492 = vmul.f32 %v460, 0.044715
    %v493 = vmul.f32 %v461, 0.044715
    %v494 = vmul.f32 %v462, 0.044715
    %v495 = vmul.f32 %v463, 0.044715
    %v496 = vmul.f32 %v464, 0.044715
    %v497 = vmul.f32 %v465, 0.044715
    %v498 = vmul.f32 %v466, 0.044715
    %v499 = vmul.f32 %v467, 0.044715
    %v500 = vmul.f32 %v468, 0.044715
    %v501 = vmul.f32 %v469, 0.044715
    %v502 = vmul.f32 %v470, 0.044715
    %v503 = vmul.f32 %v471, 0.044715
    %v504 = vmul.f32 %v472, 0.044715
    %v505 = vmul.f32 %v473, 0.044715
    %v506 = vmul.f32 %v474, 0.044715
    %v507 = vmul.f32 %v475, 0.044715
    %v508 = vmul.f32 %v476, 0.044715
    %v509 = vmul.f32 %v477, 0.044715
    %v510 = vmul.f32 %v478, 0.044715
    %v511 = vmul.f32 %v479, 0.044715
    %v512 = vmul.f32 %v480, 0.044715
    %v513 = vmul.f32 %v481, 0.044715
    %v514 = vmul.f32 %v482, 0.044715
    %v515 = vmul.f32 %v483, 0.044715
    %v516 = vmul.f32 %v484, 0.044715
    %v517 = vmul.f32 %v485, 0.044715
    %v518 = vmul.f32 %v486, 0.044715
    %v519 = vadd.f32 %v297, %v487
    %v520 = vadd.f32 %v300, %v488
    %v521 = vadd.f32 %v305, %v489
    %v522 = vadd.f32 %v308, %v490
    %v523 = vadd.f32 %v313, %v491
    %v524 = vadd.f32 %v316, %v492
    %v525 = vadd.f32 %v321, %v493
    %v526 = vadd.f32 %v324, %v494
    %v527 = vadd.f32 %v329, %v495
    %v528 = vadd.f32 %v332, %v496
    %v529 = vadd.f32 %v337, %v497
    %v530 = vadd.f32 %v340, %v498
    %v531 = vadd.f32 %v345, %v499
    %v532 = vadd.f32 %v348, %v500
    %v533 = vadd.f32 %v353, %v501
    %v534 = vadd.f32 %v356, %v502
    %v535 = vadd.f32 %v361, %v503
    %v536 = vadd.f32 %v364, %v504
    %v537 = vadd.f32 %v369, %v505
    %v538 = vadd.f32 %v372, %v506
    %v539 = vadd.f32 %v377, %v507
    %v540 = vadd.f32 %v380, %v508
    %v541 = vadd.f32 %v385, %v509
    %v542 = vadd.f32 %v388, %v510
    %v543 = vadd.f32 %v393, %v511
    %v544 = vadd.f32 %v396, %v512
    %v545 = vadd.f32 %v401, %v513
    %v546 = vadd.f32 %v404, %v514
    %v547 = vadd.f32 %v409, %v515
    %v548 = vadd.f32 %v412, %v516
    %v549 = vadd.f32 %v417, %v517
    %v550 = vadd.f32 %v420, %v518
    %v551 = vmul.f32 %v519, 0.7978846
    %v552 = vmul.f32 %v520, 0.7978846
    %v553 = vmul.f32 %v521, 0.7978846
    %v554 = vmul.f32 %v522, 0.7978846
    %v555 = vmul.f32 %v523, 0.7978846
    %v556 = vmul.f32 %v524, 0.7978846
    %v557 = vmul.f32 %v525, 0.7978846
    %v558 = vmul.f32 %v526, 0.7978846
    %v559 = vmul.f32 %v527, 0.7978846
    %v560 = vmul.f32 %v528, 0.7978846
    %v561 = vmul.f32 %v529, 0.7978846
    %v562 = vmul.f32 %v530, 0.7978846
    %v563 = vmul.f32 %v531, 0.7978846
    %v564 = vmul.f32 %v532, 0.7978846
    %v565 = vmul.f32 %v533, 0.7978846
    %v566 = vmul.f32 %v534, 0.7978846
    %v567 = vmul.f32 %v535, 0.7978846
    %v568 = vmul.f32 %v536, 0.7978846
    %v569 = vmul.f32 %v537, 0.7978846
    %v570 = vmul.f32 %v538, 0.7978846
    %v571 = vmul.f32 %v539, 0.7978846
    %v572 = vmul.f32 %v540, 0.7978846
    %v573 = vmul.f32 %v541, 0.7978846
    %v574 = vmul.f32 %v542, 0.7978846
    %v575 = vmul.f32 %v543, 0.7978846
    %v576 = vmul.f32 %v544, 0.7978846
    %v577 = vmul.f32 %v545, 0.7978846
    %v578 = vmul.f32 %v546, 0.7978846
    %v579 = vmul.f32 %v547, 0.7978846
    %v580 = vmul.f32 %v548, 0.7978846
    %v581 = vmul.f32 %v549, 0.7978846
    %v582 = vmul.f32 %v550, 0.7978846
    %v583 = vtanh.pop %v551
    %v584 = vtanh.pop %v552
    %v585 = vtanh.pop %v553
    %v586 = vtanh.pop %v554
    %v587 = vtanh.pop %v555
    %v588 = vtanh.pop %v556
    %v589 = vtanh.pop %v557
    %v590 = vtanh.pop %v558
    %v591 = vtanh.pop %v559
    %v592 = vtanh.pop %v560
    %v593 = vtanh.pop %v561
    %v594 = vtanh.pop %v562
    %v595 = vtanh.pop %v563
    %v596 = vtanh.pop %v564
    %v597 = vtanh.pop %v565
    %v598 = vtanh.pop %v566
    %v599 = vtanh.pop %v567
    %v600 = vtanh.pop %v568
    %v601 = vtanh.pop %v569
    %v602 = vtanh.pop %v570
    %v603 = vtanh.pop %v571
    %v604 = vtanh.pop %v572
    %v605 = vtanh.pop %v573
    %v606 = vtanh.pop %v574
    %v607 = vtanh.pop %v575
    %v608 = vtanh.pop %v576
    %v609 = vtanh.pop %v577
    %v610 = vtanh.pop %v578
    %v611 = vtanh.pop %v579
    %v612 = vtanh.pop %v580
    %v613 = vtanh.pop %v581
    %v614 = vtanh.pop %v582
    %v615 = vadd.f32 %v583, 1.0
    %v616 = vadd.f32 %v584, 1.0
    %v617 = vadd.f32 %v585, 1.0
    %v618 = vadd.f32 %v586, 1.0
    %v619 = vadd.f32 %v587, 1.0
    %v620 = vadd.f32 %v588, 1.0
    %v621 = vadd.f32 %v589, 1.0
    %v622 = vadd.f32 %v590, 1.0
    %v623 = vadd.f32 %v591, 1.0
    %v624 = vadd.f32 %v592, 1.0
    %v625 = vadd.f32 %v593, 1.0
    %v626 = vadd.f32 %v594, 1.0
    %v627 = vadd.f32 %v595, 1.0
    %v628 = vadd.f32 %v596, 1.0
    %v629 = vadd.f32 %v597, 1.0
    %v630 = vadd.f32 %v598, 1.0
    %v631 = vadd.f32 %v599, 1.0
    %v632 = vadd.f32 %v600, 1.0
    %v633 = vadd.f32 %v601, 1.0
    %v634 = vadd.f32 %v602, 1.0
    %v635 = vadd.f32 %v603, 1.0
    %v636 = vadd.f32 %v604, 1.0
    %v637 = vadd.f32 %v605, 1.0
    %v638 = vadd.f32 %v606, 1.0
    %v639 = vadd.f32 %v607, 1.0
    %v640 = vadd.f32 %v608, 1.0
    %v641 = vadd.f32 %v609, 1.0
    %v642 = vadd.f32 %v610, 1.0
    %v643 = vadd.f32 %v611, 1.0
    %v644 = vadd.f32 %v612, 1.0
    %v645 = vadd.f32 %v613, 1.0
    %v646 = vadd.f32 %v614, 1.0
    %v647 = vmul.f32 %v615, 0.5
    %v648 = vmul.f32 %v616, 0.5
    %v649 = vmul.f32 %v617, 0.5
    %v650 = vmul.f32 %v618, 0.5
    %v651 = vmul.f32 %v619, 0.5
    %v652 = vmul.f32 %v620, 0.5
    %v653 = vmul.f32 %v621, 0.5
    %v654 = vmul.f32 %v622, 0.5
    %v655 = vmul.f32 %v623, 0.5
    %v656 = vmul.f32 %v624, 0.5
    %v657 = vmul.f32 %v625, 0.5
    %v658 = vmul.f32 %v626, 0.5
    %v659 = vmul.f32 %v627, 0.5
    %v660 = vmul.f32 %v628, 0.5
    %v661 = vmul.f32 %v629, 0.5
    %v662 = vmul.f32 %v630, 0.5
    %v663 = vmul.f32 %v631, 0.5
    %v664 = vmul.f32 %v632, 0.5
    %v665 = vmul.f32 %v633, 0.5
    %v666 = vmul.f32 %v634, 0.5
    %v667 = vmul.f32 %v635, 0.5
    %v668 = vmul.f32 %v636, 0.5
    %v669 = vmul.f32 %v637, 0.5
    %v670 = vmul.f32 %v638, 0.5
    %v671 = vmul.f32 %v639, 0.5
    %v672 = vmul.f32 %v640, 0.5
    %v673 = vmul.f32 %v641, 0.5
    %v674 = vmul.f32 %v642, 0.5
    %v675 = vmul.f32 %v643, 0.5
    %v676 = vmul.f32 %v644, 0.5
    %v677 = vmul.f32 %v645, 0.5
    %v678 = vmul.f32 %v646, 0.5
    %v679 = vmul.f32 %v297, %v647
    %v680 = vmul.f32 %v300, %v648
    %v681 = vmul.f32 %v305, %v649
    %v682 = vmul.f32 %v308, %v650
    %v683 = vmul.f32 %v313, %v651
    %v684 = vmul.f32 %v316, %v652
    %v685 = vmul.f32 %v321, %v653
    %v686 = vmul.f32 %v324, %v654
    %v687 = vmul.f32 %v329, %v655
    %v688 = vmul.f32 %v332, %v656
    %v689 = vmul.f32 %v337, %v657
    %v690 = vmul.f32 %v340, %v658
    %v691 = vmul.f32 %v345, %v659
    %v692 = vmul.f32 %v348, %v660
    %v693 = vmul.f32 %v353, %v661
    %v694 = vmul.f32 %v356, %v662
    %v695 = vmul.f32 %v361, %v663
    %v696 = vmul.f32 %v364, %v664
    %v697 = vmul.f32 %v369, %v665
    %v698 = vmul.f32 %v372, %v666
    %v699 = vmul.f32 %v377, %v667
    %v700 = vmul.f32 %v380, %v668
    %v701 = vmul.f32 %v385, %v669
    %v702 = vmul.f32 %v388, %v670
    %v703 = vmul.f32 %v393, %v671
    %v704 = vmul.f32 %v396, %v672
    %v705 = vmul.f32 %v401, %v673
    %v706 = vmul.f32 %v404, %v674
    %v707 = vmul.f32 %v409, %v675
    %v708 = vmul.f32 %v412, %v676
    %v709 = vmul.f32 %v417, %v677
    %v710 = vmul.f32 %v420, %v678
    %v711 = vpack.c.bf16 %v680, %v679
    %v712 = vpack.c.bf16 %v682, %v681
    %v713 = vpack.c.bf16 %v684, %v683
    %v714 = vpack.c.bf16 %v686, %v685
    %v715 = vpack.c.bf16 %v688, %v687
    %v716 = vpack.c.bf16 %v690, %v689
    %v717 = vpack.c.bf16 %v692, %v691
    %v718 = vpack.c.bf16 %v694, %v693
    %v719 = vpack.c.bf16 %v696, %v695
    %v720 = vpack.c.bf16 %v698, %v697
    %v721 = vpack.c.bf16 %v700, %v699
    %v722 = vpack.c.bf16 %v702, %v701
    %v723 = vpack.c.bf16 %v704, %v703
    %v724 = vpack.c.bf16 %v706, %v705
    %v725 = vpack.c.bf16 %v708, %v707
    %v726 = vpack.c.bf16 %v710, %v709
    %v727 = vld [vmem:[#allocation7] sm:$0xf]
    %v728 = vld [vmem:[#allocation7 + $0x4] sm:$0xf]
    %v729 = vld [vmem:[#allocation7 + $0x8] sm:$0xf]
    %v730 = vld [vmem:[#allocation7 + $0xc] sm:$0xf]
    %v731 = vld [vmem:[#allocation7 + $0x10] sm:$0xf]
    %v732 = vld [vmem:[#allocation7 + $0x14] sm:$0xf]
    %v733 = vld [vmem:[#allocation7 + $0x18] sm:$0xf]
    %v734 = vld [vmem:[#allocation7 + $0x1c] sm:$0xf]
    %v735 = vld [vmem:[#allocation7 + $0x20] sm:$0xf]
    %v736 = vld [vmem:[#allocation7 + $0x24] sm:$0xf]
    %v737 = vld [vmem:[#allocation7 + $0x28] sm:$0xf]
    %v738 = vld [vmem:[#allocation7 + $0x2c] sm:$0xf]
    %v739 = vld [vmem:[#allocation7 + $0x30] sm:$0xf]
    %v740 = vld [vmem:[#allocation7 + $0x34] sm:$0xf]
    %v741 = vld [vmem:[#allocation7 + $0x38] sm:$0xf]
    %v742 = vld [vmem:[#allocation7 + $0x3c] sm:$0xf]
    %v743 = vld [vmem:[%s4] sm:$0x1]
    %v745 = vlaneseq
    %v746 = vshrl.u32 %v745, 7
    %v747 = vsub.s32 0, %v746
    %v748 = vrot.slane %v743, %v747
    %v766 = vunpack.c.l.b16 %v727
    %v767 = vunpack.c.l.b16 %v728
    %v768 = vunpack.c.l.b16 %v729
    %v769 = vunpack.c.l.b16 %v730
    %v770 = vunpack.c.l.b16 %v731
    %v771 = vunpack.c.l.b16 %v732
    %v772 = vunpack.c.l.b16 %v733
    %v773 = vunpack.c.l.b16 %v734
    %v774 = vunpack.c.l.b16 %v735
    %v775 = vunpack.c.l.b16 %v736
    %v776 = vunpack.c.l.b16 %v737
    %v777 = vunpack.c.l.b16 %v738
    %v778 = vunpack.c.l.b16 %v739
    %v779 = vunpack.c.l.b16 %v740
    %v780 = vunpack.c.l.b16 %v741
    %v781 = vunpack.c.l.b16 %v742
    %v782 = vpack.c.b16 %v767, %v766
    %v783 = vpack.c.b16 %v769, %v768
    %v784 = vpack.c.b16 %v771, %v770
    %v785 = vpack.c.b16 %v773, %v772
    %v786 = vpack.c.b16 %v775, %v774
    %v787 = vpack.c.b16 %v777, %v776
    %v788 = vpack.c.b16 %v779, %v778
    %v789 = vpack.c.b16 %v781, %v780
    %798 = vmatprep.subr.bf16.mxu0 0
    %799 = vmatpush1.bf16.msra.mxu0 %v782
    %800 = vmatprep.subr.bf16.mxu0 0
    %801 = vmatpush1.bf16.msra.mxu0 %v783
    %802 = vmatprep.subr.bf16.mxu0 0
    %803 = vmatpush1.bf16.msra.mxu0 %v784
    %804 = vmatprep.subr.bf16.mxu0 0
    %805 = vmatpush1.bf16.msra.mxu0 %v785
    %806 = vmatprep.subr.bf16.mxu0 0
    %807 = vmatpush1.bf16.msra.mxu0 %v786
    %808 = vmatprep.subr.bf16.mxu0 0
    %809 = vmatpush1.bf16.msra.mxu0 %v787
    %810 = vmatprep.subr.bf16.mxu0 0
    %811 = vmatpush1.bf16.msra.mxu0 %v788
    %812 = vmatprep.subr.bf16.mxu0 0
    %813 = vmatpush1.bf16.msra.mxu0 %v789
    %814 = vmatprep.subr.bf16.mxu0 0
    %815 = vmatpush1.bf16.msra.mxu0 0
    %816 = vmatprep.subr.bf16.mxu0 0
    %817 = vmatpush1.bf16.msra.mxu0 0
    %818 = vmatprep.subr.bf16.mxu0 0
    %819 = vmatpush1.bf16.msra.mxu0 0
    %820 = vmatprep.subr.bf16.mxu0 0
    %821 = vmatpush1.bf16.msra.mxu0 0
    %822 = vmatprep.subr.bf16.mxu0 0
    %823 = vmatpush1.bf16.msra.mxu0 0
    %824 = vmatprep.subr.bf16.mxu0 0
    %825 = vmatpush1.bf16.msra.mxu0 0
    %826 = vmatprep.subr.bf16.mxu0 0
    %827 = vmatpush1.bf16.msra.mxu0 0
    %828 = vmatprep.subr.bf16.mxu0 0
    %829 = vmatpush1.bf16.msra.mxu0 0
    %830 = vmatprep.mubr.bf16.mxu0 0
    %831 = vmatmul.mubr.bf16.gmra.mrb[0].mxu0 %v711
    %v832 = vpop.f32.mrb[0].mxu0
    %v833 = vadd.f32 %v748, %v832
    %v834 = vpop.f32.mrb[0].mxu0
    %v835 = vpop.f32.mrb[0].mxu0
    %v836 = vadd.f32 %v748, %v835
    %v837 = vpop.f32.mrb[0].mxu0
    %838 = vmatprep.mubr.bf16.mxu0 0
    %839 = vmatmul.mubr.bf16.gmra.mrb[0].mxu0 %v712
    %v840 = vpop.f32.mrb[0].mxu0
    %v841 = vadd.f32 %v748, %v840
    %v842 = vpop.f32.mrb[0].mxu0
    %v843 = vpop.f32.mrb[0].mxu0
    %v844 = vadd.f32 %v748, %v843
    %v845 = vpop.f32.mrb[0].mxu0
    %846 = vmatprep.mubr.bf16.mxu0 0
    %847 = vmatmul.mubr.bf16.gmra.mrb[0].mxu0 %v713
    %v848 = vpop.f32.mrb[0].mxu0
    %v849 = vadd.f32 %v748, %v848
    %v850 = vpop.f32.mrb[0].mxu0
    %v851 = vpop.f32.mrb[0].mxu0
    %v852 = vadd.f32 %v748, %v851
    %v853 = vpop.f32.mrb[0].mxu0
    %854 = vmatprep.mubr.bf16.mxu0 0
    %855 = vmatmul.mubr.bf16.gmra.mrb[0].mxu0 %v714
    %v856 = vpop.f32.mrb[0].mxu0
    %v857 = vadd.f32 %v748, %v856
    %v858 = vpop.f32.mrb[0].mxu0
    %v859 = vpop.f32.mrb[0].mxu0
    %v860 = vadd.f32 %v748, %v859
    %v861 = vpop.f32.mrb[0].mxu0
    %862 = vmatprep.mubr.bf16.mxu0 0
    %863 = vmatmul.mubr.bf16.gmra.mrb[0].mxu0 %v715
    %v864 = vpop.f32.mrb[0].mxu0
    %v865 = vadd.f32 %v748, %v864
    %v866 = vpop.f32.mrb[0].mxu0
    %v867 = vpop.f32.mrb[0].mxu0
    %v868 = vadd.f32 %v748, %v867
    %v869 = vpop.f32.mrb[0].mxu0
    %870 = vmatprep.mubr.bf16.mxu0 0
    %871 = vmatmul.mubr.bf16.gmra.mrb[0].mxu0 %v716
    %v872 = vpop.f32.mrb[0].mxu0
    %v873 = vadd.f32 %v748, %v872
    %v874 = vpop.f32.mrb[0].mxu0
    %v875 = vpop.f32.mrb[0].mxu0
    %v876 = vadd.f32 %v748, %v875
    %v877 = vpop.f32.mrb[0].mxu0
    %878 = vmatprep.mubr.bf16.mxu0 0
    %879 = vmatmul.mubr.bf16.gmra.mrb[0].mxu0 %v717
    %v880 = vpop.f32.mrb[0].mxu0
    %v881 = vadd.f32 %v748, %v880
    %v882 = vpop.f32.mrb[0].mxu0
    %v883 = vpop.f32.mrb[0].mxu0
    %v884 = vadd.f32 %v748, %v883
    %v885 = vpop.f32.mrb[0].mxu0
    %886 = vmatprep.mubr.bf16.mxu0 0
    %887 = vmatmul.mubr.bf16.gmra.mrb[0].mxu0 %v718
    %v888 = vpop.f32.mrb[0].mxu0
    %v889 = vadd.f32 %v748, %v888
    %v890 = vpop.f32.mrb[0].mxu0
    %v891 = vpop.f32.mrb[0].mxu0
    %v892 = vadd.f32 %v748, %v891
    %v893 = vpop.f32.mrb[0].mxu0
    %894 = vmatprep.mubr.bf16.mxu0 0
    %895 = vmatmul.mubr.bf16.gmra.mrb[0].mxu0 %v719
    %v896 = vpop.f32.mrb[0].mxu0
    %v897 = vadd.f32 %v748, %v896
    %v898 = vpop.f32.mrb[0].mxu0
    %v899 = vpop.f32.mrb[0].mxu0
    %v900 = vadd.f32 %v748, %v899
    %v901 = vpop.f32.mrb[0].mxu0
    %902 = vmatprep.mubr.bf16.mxu0 0
    %903 = vmatmul.mubr.bf16.gmra.mrb[0].mxu0 %v720
    %v904 = vpop.f32.mrb[0].mxu0
    %v905 = vadd.f32 %v748, %v904
    %v906 = vpop.f32.mrb[0].mxu0
    %v907 = vpop.f32.mrb[0].mxu0
    %v908 = vadd.f32 %v748, %v907
    %v909 = vpop.f32.mrb[0].mxu0
    %910 = vmatprep.mubr.bf16.mxu0 0
    %911 = vmatmul.mubr.bf16.gmra.mrb[0].mxu0 %v721
    %v912 = vpop.f32.mrb[0].mxu0
    %v913 = vadd.f32 %v748, %v912
    %v914 = vpop.f32.mrb[0].mxu0
    %v915 = vpop.f32.mrb[0].mxu0
    %v916 = vadd.f32 %v748, %v915
    %v917 = vpop.f32.mrb[0].mxu0
    %918 = vmatprep.mubr.bf16.mxu0 0
    %919 = vmatmul.mubr.bf16.gmra.mrb[0].mxu0 %v722
    %v920 = vpop.f32.mrb[0].mxu0
    %v921 = vadd.f32 %v748, %v920
    %v922 = vpop.f32.mrb[0].mxu0
    %v923 = vpop.f32.mrb[0].mxu0
    %v924 = vadd.f32 %v748, %v923
    %v925 = vpop.f32.mrb[0].mxu0
    %926 = vmatprep.mubr.bf16.mxu0 0
    %927 = vmatmul.mubr.bf16.gmra.mrb[0].mxu0 %v723
    %v928 = vpop.f32.mrb[0].mxu0
    %v929 = vadd.f32 %v748, %v928
    %v930 = vpop.f32.mrb[0].mxu0
    %v931 = vpop.f32.mrb[0].mxu0
    %v932 = vadd.f32 %v748, %v931
    %v933 = vpop.f32.mrb[0].mxu0
    %934 = vmatprep.mubr.bf16.mxu0 0
    %935 = vmatmul.mubr.bf16.gmra.mrb[0].mxu0 %v724
    %v936 = vpop.f32.mrb[0].mxu0
    %v937 = vadd.f32 %v748, %v936
    %v938 = vpop.f32.mrb[0].mxu0
    %v939 = vpop.f32.mrb[0].mxu0
    %v940 = vadd.f32 %v748, %v939
    %v941 = vpop.f32.mrb[0].mxu0
    %942 = vmatprep.mubr.bf16.mxu0 0
    %943 = vmatmul.mubr.bf16.gmra.mrb[0].mxu0 %v725
    %v944 = vpop.f32.mrb[0].mxu0
    %v945 = vadd.f32 %v748, %v944
    %v946 = vpop.f32.mrb[0].mxu0
    %v947 = vpop.f32.mrb[0].mxu0
    %v948 = vadd.f32 %v748, %v947
    %v949 = vpop.f32.mrb[0].mxu0
    %950 = vmatprep.mubr.bf16.mxu0 0
    %951 = vmatmul.mubr.bf16.gmra.mrb[0].mxu0 %v726
    %v952 = vpop.f32.mrb[0].mxu0
    %v953 = vadd.f32 %v748, %v952
    %v954 = vpop.f32.mrb[0].mxu0
    %v955 = vpop.f32.mrb[0].mxu0
    %v956 = vadd.f32 %v748, %v955
    %v957 = vpop.f32.mrb[0].mxu0
    %958 = vdwg.mxu0
    %959 = vst [vmem:[#allocation8] sm:$0xff] %v833
    %960 = vst [vmem:[#allocation8 + $0x8] sm:$0xff] %v836
    %961 = vst [vmem:[#allocation8 + $0x10] sm:$0xff] %v841
    %962 = vst [vmem:[#allocation8 + $0x18] sm:$0xff] %v844
    %963 = vst [vmem:[#allocation8 + $0x20] sm:$0xff] %v849
    %964 = vst [vmem:[#allocation8 + $0x28] sm:$0xff] %v852
    %965 = vst [vmem:[#allocation8 + $0x30] sm:$0xff] %v857
    %966 = vst [vmem:[#allocation8 + $0x38] sm:$0xff] %v860
    %967 = vst [vmem:[#allocation8 + $0x40] sm:$0xff] %v865
    %968 = vst [vmem:[#allocation8 + $0x48] sm:$0xff] %v868
    %969 = vst [vmem:[#allocation8 + $0x50] sm:$0xff] %v873
    %970 = vst [vmem:[#allocation8 + $0x58] sm:$0xff] %v876
    %971 = vst [vmem:[#allocation8 + $0x60] sm:$0xff] %v881
    %972 = vst [vmem:[#allocation8 + $0x68] sm:$0xff] %v884
    %973 = vst [vmem:[#allocation8 + $0x70] sm:$0xff] %v889
    %974 = vst [vmem:[#allocation8 + $0x78] sm:$0xff] %v892
    %975 = vst [vmem:[#allocation8 + $0x80] sm:$0xff] %v897
    %976 = vst [vmem:[#allocation8 + $0x88] sm:$0xff] %v900
    %977 = vst [vmem:[#allocation8 + $0x90] sm:$0xff] %v905
    %978 = vst [vmem:[#allocation8 + $0x98] sm:$0xff] %v908
    %979 = vst [vmem:[#allocation8 + $0xa0] sm:$0xff] %v913
    %980 = vst [vmem:[#allocation8 + $0xa8] sm:$0xff] %v916
    %981 = vst [vmem:[#allocation8 + $0xb0] sm:$0xff] %v921
    %982 = vst [vmem:[#allocation8 + $0xb8] sm:$0xff] %v924
    %983 = vst [vmem:[#allocation8 + $0xc0] sm:$0xff] %v929
    %984 = vst [vmem:[#allocation8 + $0xc8] sm:$0xff] %v932
    %985 = vst [vmem:[#allocation8 + $0xd0] sm:$0xff] %v937
    %986 = vst [vmem:[#allocation8 + $0xd8] sm:$0xff] %v940
    %987 = vst [vmem:[#allocation8 + $0xe0] sm:$0xff] %v945
    %988 = vst [vmem:[#allocation8 + $0xe8] sm:$0xff] %v948
    %989 = vst [vmem:[#allocation8 + $0xf0] sm:$0xff] %v953
    %990 = vst [vmem:[#allocation8 + $0xf8] sm:$0xff] %v956
    // Predicated region
    $region34: #{tpu_custom_call.1} parent=1 // pred_check
      _
    $region35: #{tpu_custom_call.1} parent=1 // pred_check_branch
      %992 = sbr.rel (0) target = $region37
    $region36: #{tpu_custom_call.1} parent=1 // pred_region
      %s994 = ssub.s32 4096, 4096
      %995 = vsyncadd [#allocation4], %s994
      %s996 = sshll.u32 [#allocation8], 4
      %s997 = int_to_ptr.vmem [resolvable:$true] %s996
      %1002 = dma.vmem_to_hbm [thread:$0]  %s997, 4096, %s5, [#allocation4], 128, 128, 8
    $region37: #{tpu_custom_call.1} parent=1 // pred_fallthru
      _
    // Predicated region
    $region38: #{tpu_custom_call.1} parent=1 // pred_check
      _
    $region39: #{tpu_custom_call.1} parent=1 // pred_check_branch
      %1004 = sbr.rel (0) target = $region41
    $region40: #{tpu_custom_call.1} parent=1 // pred_region
      %1005 = dma.done [#allocation4], 4096
    $region41: #{tpu_custom_call.1} parent=1 // pred_fallthru
      _
    %1006 = vsyncpa [#allocation3], 1
    %1007 = vsyncpa [#allocation6], 1
    %1008 = vsyncpa [#allocation4], 1

</llo_original>
